<compile_context>
chip_gen: v5e
topology: v5e:2x2
jax: 0.10.0
libtpu: 0.0.40
codegen_flags: <defaults>
</compile_context>

<pallas_src>
import functools

import jax
import jax.numpy as jnp
from jax.experimental import pallas as pl
from jax.experimental.pallas import tpu as pltpu

_SQRT2 = 1.4142135623730951
_EPS = 1e-5


def _round_up(x, m):
  return (x + m - 1) // m * m


def _layer_norm(x, gamma, beta, n_valid):
  """LayerNorm over the last axis; reduction masked to the first n_valid cols."""
  d_pad = x.shape[-1]
  if n_valid == d_pad:
    mu = jnp.mean(x, axis=-1, keepdims=True)
    diff = x - mu
    var = jnp.mean(diff * diff, axis=-1, keepdims=True)
  else:
    mask = (jax.lax.broadcasted_iota(jnp.int32, (1, d_pad), 1)
            < n_valid).astype(x.dtype)
    inv_n = 1.0 / n_valid
    mu = jnp.sum(x * mask, axis=-1, keepdims=True) * inv_n
    diff = (x - mu) * mask           # zero on padded columns
    var = jnp.sum(diff * diff, axis=-1, keepdims=True) * inv_n
  return diff * jax.lax.rsqrt(var + _EPS) * gamma + beta


def _coder_block_kernel(
    x_ref,
    wsa_ref, bsa_ref,
    w1_ref, b1_ref,
    w2_ref, b2_ref,
    g1_ref, be1_ref,
    g2_ref, be2_ref,
    o_ref,
    *, d_model, dim_ff):
  cdt = wsa_ref.dtype                       # MXU operand dtype (bf16 or f32)
  x = x_ref[...].astype(jnp.float32)

  # self_no_attn: Linear(d_model, d_model), then residual add.
  src2 = jnp.dot(x.astype(cdt), wsa_ref[...],
                 preferred_element_type=jnp.float32) + bsa_ref[...]
  src = x + src2                            # dropout1 == identity (eval)

  # norm1 over the true d_model columns.
  h = _layer_norm(src, g1_ref[...], be1_ref[...], d_model)

  # linear1: Linear(d_model, dim_ff)
  h = jnp.dot(h.astype(cdt), w1_ref[...],
              preferred_element_type=jnp.float32) + b1_ref[...]

  # GELU (exact, erf-based — matches nn.GELU default).
  # (If a bundle dump ever shows VALU saturation, the tanh approximation would
  #  route through the otherwise-idle EUP slot.)
  g = 0.5 * h * (1.0 + jax.lax.erf(h * (1.0 / _SQRT2)))

  # linear2: Linear(dim_ff, dim_ff), then residual add.
  src2 = jnp.dot(g.astype(cdt), w2_ref[...],
                 preferred_element_type=jnp.float32) + b2_ref[...]
  src = h + src2                            # dropout2 == identity (eval)

  # norm2 over the true dim_ff columns.
  out = _layer_norm(src, g2_ref[...], be2_ref[...], dim_ff)
  o_ref[...] = out.astype(o_ref.dtype)


@functools.partial(
    jax.jit,
    static_argnames=("block_rows", "compute_dtype", "single_buffer_weights"))
def _forward_impl(src, params, *, block_rows, compute_dtype,
                  single_buffer_weights):
  seq, batch, d_model = src.shape
  dim_ff = params["w1"].shape[1]
  n_rows = seq * batch

  # Lane-dense feature dims (multiples of 128); sublane-aligned row tile.
  dmp = _round_up(d_model, 128)
  ffp = _round_up(dim_ff, 128)
  tm = min(_round_up(block_rows, 8), _round_up(n_rows, 8))
  # Make sure both v7x TensorCores get work when the whole problem would
  # otherwise fit in a single grid step.
  if n_rows > 256 and _round_up(n_rows, tm) // tm < 2:
    tm = _round_up(pl.cdiv(n_rows, 2), 8)
  rows_pad = _round_up(n_rows, tm)
  grid = (rows_pad // tm,)

  x = src.reshape(n_rows, d_model)
  x = jnp.pad(x, ((0, rows_pad - n_rows), (0, dmp - d_model)))

  def pad_mat(w, r, c):
    return jnp.pad(w.astype(compute_dtype),
                   ((0, r - w.shape[0]), (0, c - w.shape[1])))

  def pad_vec(v, c):
    return jnp.pad(v.astype(jnp.float32), (0, c - v.shape[0])).reshape(1, c)

  wsa = pad_mat(params["w_sa"], dmp, dmp)
  w1 = pad_mat(params["w1"], dmp, ffp)
  w2 = pad_mat(params["w2"], ffp, ffp)
  bsa = pad_vec(params["b_sa"], dmp)
  b1 = pad_vec(params["b1"], ffp)
  b2 = pad_vec(params["b2"], ffp)
  g1 = pad_vec(params["ln1_w"], dmp)
  be1 = pad_vec(params["ln1_b"], dmp)
  g2 = pad_vec(params["ln2_w"], ffp)
  be2 = pad_vec(params["ln2_b"], ffp)

  row_map = lambda i: (i, 0)
  full_map = lambda i: (0, 0)
  const_kw = dict(pipeline_mode=pl.Buffered(1)) if single_buffer_weights else {}

  def const_spec(shape):
    # Constant block index across the grid -> DMA'd once; single-buffered when
    # supported so the resident weights don't pay a 2x VMEM tax.
    return pl.BlockSpec(shape, full_map, **const_kw)

  in_specs = [
      pl.BlockSpec((tm, dmp), row_map),   # x tile (pipelined per grid step)
      const_spec((dmp, dmp)),             # w_sa
      const_spec((1, dmp)),               # b_sa
      const_spec((dmp, ffp)),             # w1
      const_spec((1, ffp)),               # b1
      const_spec((ffp, ffp)),             # w2
      const_spec((1, ffp)),               # b2
      const_spec((1, dmp)),               # ln1 weight
      const_spec((1, dmp)),               # ln1 bias
      const_spec((1, ffp)),               # ln2 weight
      const_spec((1, ffp)),               # ln2 bias
  ]
  out_specs = pl.BlockSpec((tm, ffp), row_map)

  # VMEM budget: resident weights (+ bias/LN vectors) + double-buffered
  # activation tiles + headroom for in-kernel f32 temporaries.
  w_item = jnp.dtype(compute_dtype).itemsize
  weight_bytes = (dmp * dmp + dmp * ffp + ffp * ffp) * w_item
  vector_bytes = 8 * (3 * dmp + 4 * ffp) * 4    # (1, D) pads to 8 sublanes
  if not single_buffer_weights:
    weight_bytes *= 2
    vector_bytes *= 2
  act_bytes = 2 * tm * (dmp + ffp) * src.dtype.itemsize
  temp_bytes = 6 * tm * ffp * 4
  est = weight_bytes + vector_bytes + act_bytes + temp_bytes
  vmem_limit = int(min(max(int(est * 1.5) + (4 << 20), 32 << 20), 100 << 20))

  kernel = functools.partial(_coder_block_kernel, d_model=d_model, dim_ff=dim_ff)

  out = pl.pallas_call(
      kernel,
      out_shape=jax.ShapeDtypeStruct((rows_pad, ffp), src.dtype),
      grid_spec=pltpu.PrefetchScalarGridSpec(
          num_scalar_prefetch=0,
          grid=grid,
          in_specs=in_specs,
          out_specs=out_specs),
      compiler_params=pltpu.CompilerParams(
          dimension_semantics=("parallel",),
          vmem_limit_bytes=vmem_limit),
  )(x, wsa, bsa, w1, b1, w2, b2, g1, be1, g2, be2)

  return out[:n_rows, :dim_ff].reshape(seq, batch, dim_ff)


_BUFFERED_SUPPORTED = hasattr(pl, "Buffered")


def coder_block_forward(src, params, *, block_rows=512,
                        compute_dtype=jnp.bfloat16):
  """src: (seq, batch, d_model) -> (seq, batch, dim_feedforward)."""
  global _BUFFERED_SUPPORTED
  if _BUFFERED_SUPPORTED:
    try:
      return _forward_impl(src, params, block_rows=block_rows,
                           compute_dtype=compute_dtype,
                           single_buffer_weights=True)
    except Exception:
      # This JAX/Mosaic build rejects pipeline_mode=pl.Buffered(1); fall back
      # to the default double-buffered constant blocks.
      _BUFFERED_SUPPORTED = False
  return _forward_impl(src, params, block_rows=block_rows,
                       compute_dtype=compute_dtype,
                       single_buffer_weights=False)


def init_params(key, d_model, dim_ff):
  ks = jax.random.split(key, 6)
  scale_dm = 1.0 / jnp.sqrt(d_model)
  scale_ff = 1.0 / jnp.sqrt(dim_ff)
  return {
      # weights stored as (in_features, out_features) for row-major matmul
      "w_sa": jax.random.uniform(ks[0], (d_model, d_model), jnp.float32,
                                 -scale_dm, scale_dm),
      "b_sa": jax.random.uniform(ks[1], (d_model,), jnp.float32,
                                 -scale_dm, scale_dm),
      "w1": jax.random.uniform(ks[2], (d_model, dim_ff), jnp.float32,
                               -scale_dm, scale_dm),
      "b1": jax.random.uniform(ks[3], (dim_ff,), jnp.float32,
                               -scale_dm, scale_dm),
      "w2": jax.random.uniform(ks[4], (dim_ff, dim_ff), jnp.float32,
                               -scale_ff, scale_ff),
      "b2": jax.random.uniform(ks[5], (dim_ff,), jnp.float32,
                               -scale_ff, scale_ff),
      "ln1_w": jnp.ones((d_model,), jnp.float32),
      "ln1_b": jnp.zeros((d_model,), jnp.float32),
      "ln2_w": jnp.ones((dim_ff,), jnp.float32),
      "ln2_b": jnp.zeros((dim_ff,), jnp.float32),
  }


def _reference(src, p):
  """Pure-JAX reference of CoderBlock.forward (dropout = identity)."""
  def ln(x, w, b):
    mu = jnp.mean(x, axis=-1, keepdims=True)
    var = jnp.mean((x - mu) ** 2, axis=-1, keepdims=True)
    return (x - mu) / jnp.sqrt(var + _EPS) * w + b

  src2 = src @ p["w_sa"] + p["b_sa"]
  src = src + src2
  src = ln(src, p["ln1_w"], p["ln1_b"]) @ p["w1"] + p["b1"]
  act = 0.5 * src * (1.0 + jax.lax.erf(src / _SQRT2))
  src2 = act @ p["w2"] + p["b2"]
  src = src + src2
  return ln(src, p["ln2_w"], p["ln2_b"])


if __name__ == "__main__":
  # Small shapes: seq=8, batch=2, d_model=32, dim_feedforward=64.
  seq, batch, d_model, dim_ff = 8, 2, 32, 64
  key = jax.random.PRNGKey(0)
  k_x, k_p = jax.random.split(key)
  src = jax.random.normal(k_x, (seq, batch, d_model), jnp.float32)
  params = init_params(k_p, d_model, dim_ff)
  ref = _reference(src, params)

  # 1) Exact-semantics check: f32 MXU operands.
  out_f32 = jax.block_until_ready(
      coder_block_forward(src, params, compute_dtype=jnp.float32))
  assert out_f32.shape == (seq, batch, dim_ff)
  assert jnp.allclose(out_f32, ref, atol=1e-4, rtol=1e-4), (
      float(jnp.max(jnp.abs(out_f32 - ref))))

  # 2) Fast path (default): bf16 MXU operands, f32 accumulation.
  out_bf16 = jax.block_until_ready(coder_block_forward(src, params))
  assert out_bf16.shape == (seq, batch, dim_ff)
  assert jnp.allclose(out_bf16, ref, atol=1e-1, rtol=1e-1), (
      float(jnp.max(jnp.abs(out_bf16 - ref))))

  print("KERNEL_OK")
</pallas_src>

<mosaic_0001>
module attributes {stable_mosaic.version = 11 : i64} {
  func.func @_coder_block_kernel(%arg0: i32, %arg1: memref<16x128xf32, #tpu.memory_space<vmem>>, %arg2: memref<128x128xf32, #tpu.memory_space<vmem>>, %arg3: memref<1x128xf32, #tpu.memory_space<vmem>>, %arg4: memref<128x128xf32, #tpu.memory_space<vmem>>, %arg5: memref<1x128xf32, #tpu.memory_space<vmem>>, %arg6: memref<128x128xf32, #tpu.memory_space<vmem>>, %arg7: memref<1x128xf32, #tpu.memory_space<vmem>>, %arg8: memref<1x128xf32, #tpu.memory_space<vmem>>, %arg9: memref<1x128xf32, #tpu.memory_space<vmem>>, %arg10: memref<1x128xf32, #tpu.memory_space<vmem>>, %arg11: memref<1x128xf32, #tpu.memory_space<vmem>>, %arg12: memref<16x128xf32, #tpu.memory_space<vmem>>) attributes {dimension_semantics = [#tpu.dimension_semantics<parallel>], iteration_bounds = array<i64: 1>, scalar_prefetch = 0 : i64, scratch_operands = 0 : i64, tpu.core_type = #tpu.core_type<tc>, window_params = [{transform_indices = @transform_0, window_bounds = array<i64: 16, 128>}, {pipeline_mode = #tpu.pipeline_mode<synchronous>, transform_indices = @transform_1, window_bounds = array<i64: 128, 128>}, {pipeline_mode = #tpu.pipeline_mode<synchronous>, transform_indices = @transform_2, window_bounds = array<i64: 1, 128>}, {pipeline_mode = #tpu.pipeline_mode<synchronous>, transform_indices = @transform_3, window_bounds = array<i64: 128, 128>}, {pipeline_mode = #tpu.pipeline_mode<synchronous>, transform_indices = @transform_4, window_bounds = array<i64: 1, 128>}, {pipeline_mode = #tpu.pipeline_mode<synchronous>, transform_indices = @transform_5, window_bounds = array<i64: 128, 128>}, {pipeline_mode = #tpu.pipeline_mode<synchronous>, transform_indices = @transform_6, window_bounds = array<i64: 1, 128>}, {pipeline_mode = #tpu.pipeline_mode<synchronous>, transform_indices = @transform_7, window_bounds = array<i64: 1, 128>}, {pipeline_mode = #tpu.pipeline_mode<synchronous>, transform_indices = @transform_8, window_bounds = array<i64: 1, 128>}, {pipeline_mode = #tpu.pipeline_mode<synchronous>, transform_indices = @transform_9, window_bounds = array<i64: 1, 128>}, {pipeline_mode = #tpu.pipeline_mode<synchronous>, transform_indices = @transform_10, window_bounds = array<i64: 1, 128>}, {transform_indices = @transform_11, window_bounds = array<i64: 16, 128>}]} {
    %c0 = arith.constant 0 : index
    %c0_0 = arith.constant 0 : index
    %0 = vector.load %arg1[%c0, %c0_0] : memref<16x128xf32, #tpu.memory_space<vmem>>, vector<16x128xf32>
    %c0_1 = arith.constant 0 : index
    %c0_2 = arith.constant 0 : index
    %1 = vector.load %arg2[%c0_1, %c0_2] : memref<128x128xf32, #tpu.memory_space<vmem>>, vector<128x128xf32>
    %cst = arith.constant dense<0.000000e+00> : vector<16x128xf32>
    %2 = tpu.matmul %0, %1, %cst {dimension_numbers = #tpu.dot_dimension_numbers<[1], [0], [0], [1], [0, 0, 1, 1], [], []>} : vector<16x128xf32>, vector<128x128xf32>, vector<16x128xf32> -> vector<16x128xf32>
    %c0_3 = arith.constant 0 : index
    %c0_4 = arith.constant 0 : index
    %3 = vector.load %arg3[%c0_3, %c0_4] : memref<1x128xf32, #tpu.memory_space<vmem>>, vector<1x128xf32>
    %4 = vector.broadcast %3 : vector<1x128xf32> to vector<16x128xf32>
    %5 = arith.addf %2, %4 : vector<16x128xf32>
    %6 = arith.addf %0, %5 : vector<16x128xf32>
    %c0_5 = arith.constant 0 : index
    %c0_6 = arith.constant 0 : index
    %7 = vector.load %arg8[%c0_5, %c0_6] : memref<1x128xf32, #tpu.memory_space<vmem>>, vector<1x128xf32>
    %c0_7 = arith.constant 0 : index
    %c0_8 = arith.constant 0 : index
    %8 = vector.load %arg9[%c0_7, %c0_8] : memref<1x128xf32, #tpu.memory_space<vmem>>, vector<1x128xf32>
    %9 = tpu.iota {dimensions = array<i32: 1>} : vector<1x128xi32>
    %c32_i32 = arith.constant 32 : i32
    %10 = vector.broadcast %c32_i32 : i32 to vector<1x128xi32>
    %11 = arith.cmpi slt, %9, %10 : vector<1x128xi32>
    %12 = arith.extui %11 : vector<1x128xi1> to vector<1x128xi32>
    %13 = arith.sitofp %12 : vector<1x128xi32> to vector<1x128xf32>
    %14 = vector.broadcast %13 : vector<1x128xf32> to vector<16x128xf32>
    %15 = arith.mulf %6, %14 : vector<16x128xf32>
    %cst_9 = arith.constant dense<0.000000e+00> : vector<16xf32>
    %16 = vector.multi_reduction <add>, %15, %cst_9 [1] : vector<16x128xf32> to vector<16xf32>
    %17 = vector.shape_cast %16 : vector<16xf32> to vector<16x1xf32>
    %cst_10 = arith.constant 3.125000e-02 : f32
    %18 = vector.broadcast %cst_10 : f32 to vector<16x1xf32>
    %19 = arith.mulf %17, %18 : vector<16x1xf32>
    %20 = vector.broadcast %19 : vector<16x1xf32> to vector<16x128xf32>
    %21 = arith.subf %6, %20 : vector<16x128xf32>
    %22 = vector.broadcast %13 : vector<1x128xf32> to vector<16x128xf32>
    %23 = arith.mulf %21, %22 : vector<16x128xf32>
    %24 = arith.mulf %23, %23 : vector<16x128xf32>
    %cst_11 = arith.constant dense<0.000000e+00> : vector<16xf32>
    %25 = vector.multi_reduction <add>, %24, %cst_11 [1] : vector<16x128xf32> to vector<16xf32>
    %26 = vector.shape_cast %25 : vector<16xf32> to vector<16x1xf32>
    %cst_12 = arith.constant 3.125000e-02 : f32
    %27 = vector.broadcast %cst_12 : f32 to vector<16x1xf32>
    %28 = arith.mulf %26, %27 : vector<16x1xf32>
    %cst_13 = arith.constant 9.99999974E-6 : f32
    %29 = vector.broadcast %cst_13 : f32 to vector<16x1xf32>
    %30 = arith.addf %28, %29 : vector<16x1xf32>
    %31 = math.rsqrt %30 : vector<16x1xf32>
    %32 = vector.broadcast %31 : vector<16x1xf32> to vector<16x128xf32>
    %33 = arith.mulf %23, %32 : vector<16x128xf32>
    %34 = vector.broadcast %7 : vector<1x128xf32> to vector<16x128xf32>
    %35 = arith.mulf %33, %34 : vector<16x128xf32>
    %36 = vector.broadcast %8 : vector<1x128xf32> to vector<16x128xf32>
    %37 = arith.addf %35, %36 : vector<16x128xf32>
    %c0_14 = arith.constant 0 : index
    %c0_15 = arith.constant 0 : index
    %38 = vector.load %arg4[%c0_14, %c0_15] : memref<128x128xf32, #tpu.memory_space<vmem>>, vector<128x128xf32>
    %cst_16 = arith.constant dense<0.000000e+00> : vector<16x128xf32>
    %39 = tpu.matmul %37, %38, %cst_16 {dimension_numbers = #tpu.dot_dimension_numbers<[1], [0], [0], [1], [0, 0, 1, 1], [], []>} : vector<16x128xf32>, vector<128x128xf32>, vector<16x128xf32> -> vector<16x128xf32>
    %c0_17 = arith.constant 0 : index
    %c0_18 = arith.constant 0 : index
    %40 = vector.load %arg5[%c0_17, %c0_18] : memref<1x128xf32, #tpu.memory_space<vmem>>, vector<1x128xf32>
    %41 = vector.broadcast %40 : vector<1x128xf32> to vector<16x128xf32>
    %42 = arith.addf %39, %41 : vector<16x128xf32>
    %cst_19 = arith.constant 5.000000e-01 : f32
    %43 = vector.broadcast %cst_19 : f32 to vector<16x128xf32>
    %44 = arith.mulf %43, %42 : vector<16x128xf32>
    %cst_20 = arith.constant 0.707106769 : f32
    %45 = vector.broadcast %cst_20 : f32 to vector<16x128xf32>
    %46 = arith.mulf %42, %45 : vector<16x128xf32>
    %47 = math.erf %46 : vector<16x128xf32>
    %cst_21 = arith.constant 1.000000e+00 : f32
    %48 = vector.broadcast %cst_21 : f32 to vector<16x128xf32>
    %49 = arith.addf %48, %47 : vector<16x128xf32>
    %50 = arith.mulf %44, %49 : vector<16x128xf32>
    %c0_22 = arith.constant 0 : index
    %c0_23 = arith.constant 0 : index
    %51 = vector.load %arg6[%c0_22, %c0_23] : memref<128x128xf32, #tpu.memory_space<vmem>>, vector<128x128xf32>
    %cst_24 = arith.constant dense<0.000000e+00> : vector<16x128xf32>
    %52 = tpu.matmul %50, %51, %cst_24 {dimension_numbers = #tpu.dot_dimension_numbers<[1], [0], [0], [1], [0, 0, 1, 1], [], []>} : vector<16x128xf32>, vector<128x128xf32>, vector<16x128xf32> -> vector<16x128xf32>
    %c0_25 = arith.constant 0 : index
    %c0_26 = arith.constant 0 : index
    %53 = vector.load %arg7[%c0_25, %c0_26] : memref<1x128xf32, #tpu.memory_space<vmem>>, vector<1x128xf32>
    %54 = vector.broadcast %53 : vector<1x128xf32> to vector<16x128xf32>
    %55 = arith.addf %52, %54 : vector<16x128xf32>
    %56 = arith.addf %42, %55 : vector<16x128xf32>
    %c0_27 = arith.constant 0 : index
    %c0_28 = arith.constant 0 : index
    %57 = vector.load %arg10[%c0_27, %c0_28] : memref<1x128xf32, #tpu.memory_space<vmem>>, vector<1x128xf32>
    %c0_29 = arith.constant 0 : index
    %c0_30 = arith.constant 0 : index
    %58 = vector.load %arg11[%c0_29, %c0_30] : memref<1x128xf32, #tpu.memory_space<vmem>>, vector<1x128xf32>
    %59 = tpu.iota {dimensions = array<i32: 1>} : vector<1x128xi32>
    %c64_i32 = arith.constant 64 : i32
    %60 = vector.broadcast %c64_i32 : i32 to vector<1x128xi32>
    %61 = arith.cmpi slt, %59, %60 : vector<1x128xi32>
    %62 = arith.extui %61 : vector<1x128xi1> to vector<1x128xi32>
    %63 = arith.sitofp %62 : vector<1x128xi32> to vector<1x128xf32>
    %64 = vector.broadcast %63 : vector<1x128xf32> to vector<16x128xf32>
    %65 = arith.mulf %56, %64 : vector<16x128xf32>
    %cst_31 = arith.constant dense<0.000000e+00> : vector<16xf32>
    %66 = vector.multi_reduction <add>, %65, %cst_31 [1] : vector<16x128xf32> to vector<16xf32>
    %67 = vector.shape_cast %66 : vector<16xf32> to vector<16x1xf32>
    %cst_32 = arith.constant 1.562500e-02 : f32
    %68 = vector.broadcast %cst_32 : f32 to vector<16x1xf32>
    %69 = arith.mulf %67, %68 : vector<16x1xf32>
    %70 = vector.broadcast %69 : vector<16x1xf32> to vector<16x128xf32>
    %71 = arith.subf %56, %70 : vector<16x128xf32>
    %72 = vector.broadcast %63 : vector<1x128xf32> to vector<16x128xf32>
    %73 = arith.mulf %71, %72 : vector<16x128xf32>
    %74 = arith.mulf %73, %73 : vector<16x128xf32>
    %cst_33 = arith.constant dense<0.000000e+00> : vector<16xf32>
    %75 = vector.multi_reduction <add>, %74, %cst_33 [1] : vector<16x128xf32> to vector<16xf32>
    %76 = vector.shape_cast %75 : vector<16xf32> to vector<16x1xf32>
    %cst_34 = arith.constant 1.562500e-02 : f32
    %77 = vector.broadcast %cst_34 : f32 to vector<16x1xf32>
    %78 = arith.mulf %76, %77 : vector<16x1xf32>
    %cst_35 = arith.constant 9.99999974E-6 : f32
    %79 = vector.broadcast %cst_35 : f32 to vector<16x1xf32>
    %80 = arith.addf %78, %79 : vector<16x1xf32>
    %81 = math.rsqrt %80 : vector<16x1xf32>
    %82 = vector.broadcast %81 : vector<16x1xf32> to vector<16x128xf32>
    %83 = arith.mulf %73, %82 : vector<16x128xf32>
    %84 = vector.broadcast %57 : vector<1x128xf32> to vector<16x128xf32>
    %85 = arith.mulf %83, %84 : vector<16x128xf32>
    %86 = vector.broadcast %58 : vector<1x128xf32> to vector<16x128xf32>
    %87 = arith.addf %85, %86 : vector<16x128xf32>
    %c0_36 = arith.constant 0 : index
    %c0_37 = arith.constant 0 : index
    %88 = vector.load %arg12[%c0_36, %c0_37] : memref<16x128xf32, #tpu.memory_space<vmem>>, vector<16x128xf32>
    tpu.vector_store %arg12[%c0_36, %c0_37], %87 {strides = array<i32>} : memref<16x128xf32, #tpu.memory_space<vmem>>, vector<16x128xf32>,
    return
  }
  func.func @transform_0(%arg0: i32) -> (i32, i32) {
    %c0_i32 = arith.constant 0 : i32
    %c0_i32_0 = arith.constant 0 : i32
    return %arg0, %c0_i32 : i32, i32
  }
  func.func @transform_1(%arg0: i32) -> (i32, i32) {
    %c0_i32 = arith.constant 0 : i32
    %c0_i32_0 = arith.constant 0 : i32
    %c0_i32_1 = arith.constant 0 : i32
    return %c0_i32, %c0_i32_0 : i32, i32
  }
  func.func @transform_2(%arg0: i32) -> (i32, i32) {
    %c0_i32 = arith.constant 0 : i32
    %c0_i32_0 = arith.constant 0 : i32
    %c0_i32_1 = arith.constant 0 : i32
    return %c0_i32, %c0_i32_0 : i32, i32
  }
  func.func @transform_3(%arg0: i32) -> (i32, i32) {
    %c0_i32 = arith.constant 0 : i32
    %c0_i32_0 = arith.constant 0 : i32
    %c0_i32_1 = arith.constant 0 : i32
    return %c0_i32, %c0_i32_0 : i32, i32
  }
  func.func @transform_4(%arg0: i32) -> (i32, i32) {
    %c0_i32 = arith.constant 0 : i32
    %c0_i32_0 = arith.constant 0 : i32
    %c0_i32_1 = arith.constant 0 : i32
    return %c0_i32, %c0_i32_0 : i32, i32
  }
  func.func @transform_5(%arg0: i32) -> (i32, i32) {
    %c0_i32 = arith.constant 0 : i32
    %c0_i32_0 = arith.constant 0 : i32
    %c0_i32_1 = arith.constant 0 : i32
    return %c0_i32, %c0_i32_0 : i32, i32
  }
  func.func @transform_6(%arg0: i32) -> (i32, i32) {
    %c0_i32 = arith.constant 0 : i32
    %c0_i32_0 = arith.constant 0 : i32
    %c0_i32_1 = arith.constant 0 : i32
    return %c0_i32, %c0_i32_0 : i32, i32
  }
  func.func @transform_7(%arg0: i32) -> (i32, i32) {
    %c0_i32 = arith.constant 0 : i32
    %c0_i32_0 = arith.constant 0 : i32
    %c0_i32_1 = arith.constant 0 : i32
    return %c0_i32, %c0_i32_0 : i32, i32
  }
  func.func @transform_8(%arg0: i32) -> (i32, i32) {
    %c0_i32 = arith.constant 0 : i32
    %c0_i32_0 = arith.constant 0 : i32
    %c0_i32_1 = arith.constant 0 : i32
    return %c0_i32, %c0_i32_0 : i32, i32
  }
  func.func @transform_9(%arg0: i32) -> (i32, i32) {
    %c0_i32 = arith.constant 0 : i32
    %c0_i32_0 = arith.constant 0 : i32
    %c0_i32_1 = arith.constant 0 : i32
    return %c0_i32, %c0_i32_0 : i32, i32
  }
  func.func @transform_10(%arg0: i32) -> (i32, i32) {
    %c0_i32 = arith.constant 0 : i32
    %c0_i32_0 = arith.constant 0 : i32
    %c0_i32_1 = arith.constant 0 : i32
    return %c0_i32, %c0_i32_0 : i32, i32
  }
  func.func @transform_11(%arg0: i32) -> (i32, i32) {
    %c0_i32 = arith.constant 0 : i32
    %c0_i32_0 = arith.constant 0 : i32
    return %arg0, %c0_i32 : i32, i32
  }
}

module attributes {stable_mosaic.version = 11 : i64} {
  func.func @_coder_block_kernel(%arg0: i32, %arg1: memref<16x128xf32, #tpu.memory_space<vmem>>, %arg2: memref<128x128xf32, #tpu.memory_space<vmem>>, %arg3: memref<1x128xf32, #tpu.memory_space<vmem>>, %arg4: memref<128x128xf32, #tpu.memory_space<vmem>>, %arg5: memref<1x128xf32, #tpu.memory_space<vmem>>, %arg6: memref<128x128xf32, #tpu.memory_space<vmem>>, %arg7: memref<1x128xf32, #tpu.memory_space<vmem>>, %arg8: memref<1x128xf32, #tpu.memory_space<vmem>>, %arg9: memref<1x128xf32, #tpu.memory_space<vmem>>, %arg10: memref<1x128xf32, #tpu.memory_space<vmem>>, %arg11: memref<1x128xf32, #tpu.memory_space<vmem>>, %arg12: memref<16x128xf32, #tpu.memory_space<vmem>>) attributes {dimension_semantics = [#tpu.dimension_semantics<parallel>], iteration_bounds = array<i64: 1>, scalar_prefetch = 0 : i64, scratch_operands = 0 : i64, tpu.core_type = #tpu.core_type<tc>, window_params = [{transform_indices = @transform_0, window_bounds = array<i64: 16, 128>}, {pipeline_mode = #tpu.pipeline_mode<synchronous>, transform_indices = @transform_1, window_bounds = array<i64: 128, 128>}, {pipeline_mode = #tpu.pipeline_mode<synchronous>, transform_indices = @transform_2, window_bounds = array<i64: 1, 128>}, {pipeline_mode = #tpu.pipeline_mode<synchronous>, transform_indices = @transform_3, window_bounds = array<i64: 128, 128>}, {pipeline_mode = #tpu.pipeline_mode<synchronous>, transform_indices = @transform_4, window_bounds = array<i64: 1, 128>}, {pipeline_mode = #tpu.pipeline_mode<synchronous>, transform_indices = @transform_5, window_bounds = array<i64: 128, 128>}, {pipeline_mode = #tpu.pipeline_mode<synchronous>, transform_indices = @transform_6, window_bounds = array<i64: 1, 128>}, {pipeline_mode = #tpu.pipeline_mode<synchronous>, transform_indices = @transform_7, window_bounds = array<i64: 1, 128>}, {pipeline_mode = #tpu.pipeline_mode<synchronous>, transform_indices = @transform_8, window_bounds = array<i64: 1, 128>}, {pipeline_mode = #tpu.pipeline_mode<synchronous>, transform_indices = @transform_9, window_bounds = array<i64: 1, 128>}, {pipeline_mode = #tpu.pipeline_mode<synchronous>, transform_indices = @transform_10, window_bounds = array<i64: 1, 128>}, {transform_indices = @transform_11, window_bounds = array<i64: 16, 128>}]} {
    %c0 = arith.constant 0 : index
    %c0_0 = arith.constant 0 : index
    %0 = vector.load %arg1[%c0, %c0_0] : memref<16x128xf32, #tpu.memory_space<vmem>>, vector<16x128xf32>
    %c0_1 = arith.constant 0 : index
    %c0_2 = arith.constant 0 : index
    %1 = vector.load %arg2[%c0_1, %c0_2] : memref<128x128xf32, #tpu.memory_space<vmem>>, vector<128x128xf32>
    %cst = arith.constant dense<0.000000e+00> : vector<16x128xf32>
    %2 = tpu.matmul %0, %1, %cst {dimension_numbers = #tpu.dot_dimension_numbers<[1], [0], [0], [1], [0, 0, 1, 1], [], []>} : vector<16x128xf32>, vector<128x128xf32>, vector<16x128xf32> -> vector<16x128xf32>
    %c0_3 = arith.constant 0 : index
    %c0_4 = arith.constant 0 : index
    %3 = vector.load %arg3[%c0_3, %c0_4] : memref<1x128xf32, #tpu.memory_space<vmem>>, vector<1x128xf32>
    %4 = vector.broadcast %3 : vector<1x128xf32> to vector<16x128xf32>
    %5 = arith.addf %2, %4 : vector<16x128xf32>
    %6 = arith.addf %0, %5 : vector<16x128xf32>
    %c0_5 = arith.constant 0 : index
    %c0_6 = arith.constant 0 : index
    %7 = vector.load %arg8[%c0_5, %c0_6] : memref<1x128xf32, #tpu.memory_space<vmem>>, vector<1x128xf32>
    %c0_7 = arith.constant 0 : index
    %c0_8 = arith.constant 0 : index
    %8 = vector.load %arg9[%c0_7, %c0_8] : memref<1x128xf32, #tpu.memory_space<vmem>>, vector<1x128xf32>
    %9 = tpu.iota {dimensions = array<i32: 1>} : vector<1x128xi32>
    %c32_i32 = arith.constant 32 : i32
    %10 = vector.broadcast %c32_i32 : i32 to vector<1x128xi32>
    %11 = arith.cmpi slt, %9, %10 : vector<1x128xi32>
    %12 = arith.extui %11 : vector<1x128xi1> to vector<1x128xi32>
    %13 = arith.sitofp %12 : vector<1x128xi32> to vector<1x128xf32>
    %14 = vector.broadcast %13 : vector<1x128xf32> to vector<16x128xf32>
    %15 = arith.mulf %6, %14 : vector<16x128xf32>
    %cst_9 = arith.constant dense<0.000000e+00> : vector<16xf32>
    %16 = vector.multi_reduction <add>, %15, %cst_9 [1] : vector<16x128xf32> to vector<16xf32>
    %17 = vector.shape_cast %16 : vector<16xf32> to vector<16x1xf32>
    %cst_10 = arith.constant 3.125000e-02 : f32
    %18 = vector.broadcast %cst_10 : f32 to vector<16x1xf32>
    %19 = arith.mulf %17, %18 : vector<16x1xf32>
    %20 = vector.broadcast %19 : vector<16x1xf32> to vector<16x128xf32>
    %21 = arith.subf %6, %20 : vector<16x128xf32>
    %22 = vector.broadcast %13 : vector<1x128xf32> to vector<16x128xf32>
    %23 = arith.mulf %21, %22 : vector<16x128xf32>
    %24 = arith.mulf %23, %23 : vector<16x128xf32>
    %cst_11 = arith.constant dense<0.000000e+00> : vector<16xf32>
    %25 = vector.multi_reduction <add>, %24, %cst_11 [1] : vector<16x128xf32> to vector<16xf32>
    %26 = vector.shape_cast %25 : vector<16xf32> to vector<16x1xf32>
    %cst_12 = arith.constant 3.125000e-02 : f32
    %27 = vector.broadcast %cst_12 : f32 to vector<16x1xf32>
    %28 = arith.mulf %26, %27 : vector<16x1xf32>
    %cst_13 = arith.constant 9.99999974E-6 : f32
    %29 = vector.broadcast %cst_13 : f32 to vector<16x1xf32>
    %30 = arith.addf %28, %29 : vector<16x1xf32>
    %31 = math.rsqrt %30 : vector<16x1xf32>
    %32 = vector.broadcast %31 : vector<16x1xf32> to vector<16x128xf32>
    %33 = arith.mulf %23, %32 : vector<16x128xf32>
    %34 = vector.broadcast %7 : vector<1x128xf32> to vector<16x128xf32>
    %35 = arith.mulf %33, %34 : vector<16x128xf32>
    %36 = vector.broadcast %8 : vector<1x128xf32> to vector<16x128xf32>
    %37 = arith.addf %35, %36 : vector<16x128xf32>
    %c0_14 = arith.constant 0 : index
    %c0_15 = arith.constant 0 : index
    %38 = vector.load %arg4[%c0_14, %c0_15] : memref<128x128xf32, #tpu.memory_space<vmem>>, vector<128x128xf32>
    %cst_16 = arith.constant dense<0.000000e+00> : vector<16x128xf32>
    %39 = tpu.matmul %37, %38, %cst_16 {dimension_numbers = #tpu.dot_dimension_numbers<[1], [0], [0], [1], [0, 0, 1, 1], [], []>} : vector<16x128xf32>, vector<128x128xf32>, vector<16x128xf32> -> vector<16x128xf32>
    %c0_17 = arith.constant 0 : index
    %c0_18 = arith.constant 0 : index
    %40 = vector.load %arg5[%c0_17, %c0_18] : memref<1x128xf32, #tpu.memory_space<vmem>>, vector<1x128xf32>
    %41 = vector.broadcast %40 : vector<1x128xf32> to vector<16x128xf32>
    %42 = arith.addf %39, %41 : vector<16x128xf32>
    %cst_19 = arith.constant 5.000000e-01 : f32
    %43 = vector.broadcast %cst_19 : f32 to vector<16x128xf32>
    %44 = arith.mulf %43, %42 : vector<16x128xf32>
    %cst_20 = arith.constant 0.707106769 : f32
    %45 = vector.broadcast %cst_20 : f32 to vector<16x128xf32>
    %46 = arith.mulf %42, %45 : vector<16x128xf32>
    %47 = math.erf %46 : vector<16x128xf32>
    %cst_21 = arith.constant 1.000000e+00 : f32
    %48 = vector.broadcast %cst_21 : f32 to vector<16x128xf32>
    %49 = arith.addf %48, %47 : vector<16x128xf32>
    %50 = arith.mulf %44, %49 : vector<16x128xf32>
    %c0_22 = arith.constant 0 : index
    %c0_23 = arith.constant 0 : index
    %51 = vector.load %arg6[%c0_22, %c0_23] : memref<128x128xf32, #tpu.memory_space<vmem>>, vector<128x128xf32>
    %cst_24 = arith.constant dense<0.000000e+00> : vector<16x128xf32>
    %52 = tpu.matmul %50, %51, %cst_24 {dimension_numbers = #tpu.dot_dimension_numbers<[1], [0], [0], [1], [0, 0, 1, 1], [], []>} : vector<16x128xf32>, vector<128x128xf32>, vector<16x128xf32> -> vector<16x128xf32>
    %c0_25 = arith.constant 0 : index
    %c0_26 = arith.constant 0 : index
    %53 = vector.load %arg7[%c0_25, %c0_26] : memref<1x128xf32, #tpu.memory_space<vmem>>, vector<1x128xf32>
    %54 = vector.broadcast %53 : vector<1x128xf32> to vector<16x128xf32>
    %55 = arith.addf %52, %54 : vector<16x128xf32>
    %56 = arith.addf %42, %55 : vector<16x128xf32>
    %c0_27 = arith.constant 0 : index
    %c0_28 = arith.constant 0 : index
    %57 = vector.load %arg10[%c0_27, %c0_28] : memref<1x128xf32, #tpu.memory_space<vmem>>, vector<1x128xf32>
    %c0_29 = arith.constant 0 : index
    %c0_30 = arith.constant 0 : index
    %58 = vector.load %arg11[%c0_29, %c0_30] : memref<1x128xf32, #tpu.memory_space<vmem>>, vector<1x128xf32>
    %59 = tpu.iota {dimensions = array<i32: 1>} : vector<1x128xi32>
    %c64_i32 = arith.constant 64 : i32
    %60 = vector.broadcast %c64_i32 : i32 to vector<1x128xi32>
    %61 = arith.cmpi slt, %59, %60 : vector<1x128xi32>
    %62 = arith.extui %61 : vector<1x128xi1> to vector<1x128xi32>
    %63 = arith.sitofp %62 : vector<1x128xi32> to vector<1x128xf32>
    %64 = vector.broadcast %63 : vector<1x128xf32> to vector<16x128xf32>
    %65 = arith.mulf %56, %64 : vector<16x128xf32>
    %cst_31 = arith.constant dense<0.000000e+00> : vector<16xf32>
    %66 = vector.multi_reduction <add>, %65, %cst_31 [1] : vector<16x128xf32> to vector<16xf32>
    %67 = vector.shape_cast %66 : vector<16xf32> to vector<16x1xf32>
    %cst_32 = arith.constant 1.562500e-02 : f32
    %68 = vector.broadcast %cst_32 : f32 to vector<16x1xf32>
    %69 = arith.mulf %67, %68 : vector<16x1xf32>
    %70 = vector.broadcast %69 : vector<16x1xf32> to vector<16x128xf32>
    %71 = arith.subf %56, %70 : vector<16x128xf32>
    %72 = vector.broadcast %63 : vector<1x128xf32> to vector<16x128xf32>
    %73 = arith.mulf %71, %72 : vector<16x128xf32>
    %74 = arith.mulf %73, %73 : vector<16x128xf32>
    %cst_33 = arith.constant dense<0.000000e+00> : vector<16xf32>
    %75 = vector.multi_reduction <add>, %74, %cst_33 [1] : vector<16x128xf32> to vector<16xf32>
    %76 = vector.shape_cast %75 : vector<16xf32> to vector<16x1xf32>
    %cst_34 = arith.constant 1.562500e-02 : f32
    %77 = vector.broadcast %cst_34 : f32 to vector<16x1xf32>
    %78 = arith.mulf %76, %77 : vector<16x1xf32>
    %cst_35 = arith.constant 9.99999974E-6 : f32
    %79 = vector.broadcast %cst_35 : f32 to vector<16x1xf32>
    %80 = arith.addf %78, %79 : vector<16x1xf32>
    %81 = math.rsqrt %80 : vector<16x1xf32>
    %82 = vector.broadcast %81 : vector<16x1xf32> to vector<16x128xf32>
    %83 = arith.mulf %73, %82 : vector<16x128xf32>
    %84 = vector.broadcast %57 : vector<1x128xf32> to vector<16x128xf32>
    %85 = arith.mulf %83, %84 : vector<16x128xf32>
    %86 = vector.broadcast %58 : vector<1x128xf32> to vector<16x128xf32>
    %87 = arith.addf %85, %86 : vector<16x128xf32>
    %c0_36 = arith.constant 0 : index
    %c0_37 = arith.constant 0 : index
    %88 = vector.load %arg12[%c0_36, %c0_37] : memref<16x128xf32, #tpu.memory_space<vmem>>, vector<16x128xf32>
    tpu.vector_store %arg12[%c0_36, %c0_37], %87 {strides = array<i32>} : memref<16x128xf32, #tpu.memory_space<vmem>>, vector<16x128xf32>,
    return
  }
  func.func @transform_0(%arg0: i32) -> (i32, i32) {
    %c0_i32 = arith.constant 0 : i32
    %c0_i32_0 = arith.constant 0 : i32
    return %arg0, %c0_i32 : i32, i32
  }
  func.func @transform_1(%arg0: i32) -> (i32, i32) {
    %c0_i32 = arith.constant 0 : i32
    %c0_i32_0 = arith.constant 0 : i32
    %c0_i32_1 = arith.constant 0 : i32
    return %c0_i32, %c0_i32_0 : i32, i32
  }
  func.func @transform_2(%arg0: i32) -> (i32, i32) {
    %c0_i32 = arith.constant 0 : i32
    %c0_i32_0 = arith.constant 0 : i32
    %c0_i32_1 = arith.constant 0 : i32
    return %c0_i32, %c0_i32_0 : i32, i32
  }
  func.func @transform_3(%arg0: i32) -> (i32, i32) {
    %c0_i32 = arith.constant 0 : i32
    %c0_i32_0 = arith.constant 0 : i32
    %c0_i32_1 = arith.constant 0 : i32
    return %c0_i32, %c0_i32_0 : i32, i32
  }
  func.func @transform_4(%arg0: i32) -> (i32, i32) {
    %c0_i32 = arith.constant 0 : i32
    %c0_i32_0 = arith.constant 0 : i32
    %c0_i32_1 = arith.constant 0 : i32
    return %c0_i32, %c0_i32_0 : i32, i32
  }
  func.func @transform_5(%arg0: i32) -> (i32, i32) {
    %c0_i32 = arith.constant 0 : i32
    %c0_i32_0 = arith.constant 0 : i32
    %c0_i32_1 = arith.constant 0 : i32
    return %c0_i32, %c0_i32_0 : i32, i32
  }
  func.func @transform_6(%arg0: i32) -> (i32, i32) {
    %c0_i32 = arith.constant 0 : i32
    %c0_i32_0 = arith.constant 0 : i32
    %c0_i32_1 = arith.constant 0 : i32
    return %c0_i32, %c0_i32_0 : i32, i32
  }
  func.func @transform_7(%arg0: i32) -> (i32, i32) {
    %c0_i32 = arith.constant 0 : i32
    %c0_i32_0 = arith.constant 0 : i32
    %c0_i32_1 = arith.constant 0 : i32
    return %c0_i32, %c0_i32_0 : i32, i32
  }
  func.func @transform_8(%arg0: i32) -> (i32, i32) {
    %c0_i32 = arith.constant 0 : i32
    %c0_i32_0 = arith.constant 0 : i32
    %c0_i32_1 = arith.constant 0 : i32
    return %c0_i32, %c0_i32_0 : i32, i32
  }
  func.func @transform_9(%arg0: i32) -> (i32, i32) {
    %c0_i32 = arith.constant 0 : i32
    %c0_i32_0 = arith.constant 0 : i32
    %c0_i32_1 = arith.constant 0 : i32
    return %c0_i32, %c0_i32_0 : i32, i32
  }
  func.func @transform_10(%arg0: i32) -> (i32, i32) {
    %c0_i32 = arith.constant 0 : i32
    %c0_i32_0 = arith.constant 0 : i32
    %c0_i32_1 = arith.constant 0 : i32
    return %c0_i32, %c0_i32_0 : i32, i32
  }
  func.func @transform_11(%arg0: i32) -> (i32, i32) {
    %c0_i32 = arith.constant 0 : i32
    %c0_i32_0 = arith.constant 0 : i32
    return %arg0, %c0_i32 : i32, i32
  }
}

</mosaic_0001>

<llo_original>
// kernel: _forward_impl.1
$region0: #{_forward_impl.1}
  #allocation0 [shape = 'u32[]', space=smem, size = 0x4, offset = 0x4, fixed_abs, tag = 'smem constant byte address 0x4 - core index']
  #allocation1 [shape = 'u32[72,128]{1,0:T(1,128)}', space=vmem, size = 0x9000, scoped, tag = 'internal scratch']
  %s0 = inlined_call_operand.vmem [shape: f32[16,128], index: 0, kind: input, shape index: {}]
  %s1 = inlined_call_operand.vmem [shape: f32[128,128], index: 1, kind: input, shape index: {}]
  %s2 = inlined_call_operand.vmem [shape: f32[1,128], index: 2, kind: input, shape index: {}]
  %s3 = inlined_call_operand.vmem [shape: f32[128,128], index: 3, kind: input, shape index: {}]
  %s4 = inlined_call_operand.vmem [shape: f32[1,128], index: 4, kind: input, shape index: {}]
  %s5 = inlined_call_operand.vmem [shape: f32[128,128], index: 5, kind: input, shape index: {}]
  %s6 = inlined_call_operand.vmem [shape: f32[1,128], index: 6, kind: input, shape index: {}]
  %s7 = inlined_call_operand.vmem [shape: f32[1,128], index: 7, kind: input, shape index: {}]
  %s8 = inlined_call_operand.vmem [shape: f32[1,128], index: 8, kind: input, shape index: {}]
  %s9 = inlined_call_operand.vmem [shape: f32[1,128], index: 9, kind: input, shape index: {}]
  %s10 = inlined_call_operand.vmem [shape: f32[1,128], index: 10, kind: input, shape index: {}]
  %s11 = inlined_call_operand.hbm [shape: f32[16,128], index: 11, kind: output, shape index: {}]
  %s12 = sld [smem:[#allocation0]]
  $region54: #{_forward_impl.1} parent=0
    _
  %s14 = ssub.s32 1, %s12
  %s15 = scalar_select 0, %s14, %s12
  $region1: #{_forward_impl.1} parent=0
    #allocation2 [shape = 'u8[8192]{0}', space=vmem, size = 0x2000, scoped, tag = 'output window, operand 0, single buffered']
    #allocation3 [shape = 's32[1]{0}', space=sflag, size = 0x4, scoped, tag = 'scoped memory for _forward_impl.1']
    %16 = vsyncpa [#allocation3], 0
    // Predicated region
    $region2: #{_forward_impl.1} parent=1 // pred_check
      _
    $region3: #{_forward_impl.1} parent=1 // pred_check_branch
      %18 = sbr.rel (0) target = $region5
    $region4: #{_forward_impl.1} parent=1 // pred_region
      _
    $region5: #{_forward_impl.1} parent=1 // pred_fallthru
      _
    // Predicated region
    $region6: #{_forward_impl.1} parent=1 // pred_check
      _
    $region7: #{_forward_impl.1} parent=1 // pred_check_branch
      %20 = sbr.rel (0) target = $region9
    $region8: #{_forward_impl.1} parent=1 // pred_region
      _
    $region9: #{_forward_impl.1} parent=1 // pred_fallthru
      _
    // Predicated region
    $region10: #{_forward_impl.1} parent=1 // pred_check
      _
    $region11: #{_forward_impl.1} parent=1 // pred_check_branch
      %22 = sbr.rel (0) target = $region13
    $region12: #{_forward_impl.1} parent=1 // pred_region
      _
    $region13: #{_forward_impl.1} parent=1 // pred_fallthru
      _
    // Predicated region
    $region14: #{_forward_impl.1} parent=1 // pred_check
      _
    $region15: #{_forward_impl.1} parent=1 // pred_check_branch
      %24 = sbr.rel (0) target = $region17
    $region16: #{_forward_impl.1} parent=1 // pred_region
      _
    $region17: #{_forward_impl.1} parent=1 // pred_fallthru
      _
    // Predicated region
    $region18: #{_forward_impl.1} parent=1 // pred_check
      _
    $region19: #{_forward_impl.1} parent=1 // pred_check_branch
      %26 = sbr.rel (0) target = $region21
    $region20: #{_forward_impl.1} parent=1 // pred_region
      _
    $region21: #{_forward_impl.1} parent=1 // pred_fallthru
      _
    // Predicated region
    $region22: #{_forward_impl.1} parent=1 // pred_check
      _
    $region23: #{_forward_impl.1} parent=1 // pred_check_branch
      %28 = sbr.rel (0) target = $region25
    $region24: #{_forward_impl.1} parent=1 // pred_region
      _
    $region25: #{_forward_impl.1} parent=1 // pred_fallthru
      _
    // Predicated region
    $region26: #{_forward_impl.1} parent=1 // pred_check
      _
    $region27: #{_forward_impl.1} parent=1 // pred_check_branch
      %30 = sbr.rel (0) target = $region29
    $region28: #{_forward_impl.1} parent=1 // pred_region
      _
    $region29: #{_forward_impl.1} parent=1 // pred_fallthru
      _
    // Predicated region
    $region30: #{_forward_impl.1} parent=1 // pred_check
      _
    $region31: #{_forward_impl.1} parent=1 // pred_check_branch
      %32 = sbr.rel (0) target = $region33
    $region32: #{_forward_impl.1} parent=1 // pred_region
      _
    $region33: #{_forward_impl.1} parent=1 // pred_fallthru
      _
    // Predicated region
    $region34: #{_forward_impl.1} parent=1 // pred_check
      _
    $region35: #{_forward_impl.1} parent=1 // pred_check_branch
      %34 = sbr.rel (0) target = $region37
    $region36: #{_forward_impl.1} parent=1 // pred_region
      _
    $region37: #{_forward_impl.1} parent=1 // pred_fallthru
      _
    // Predicated region
    $region38: #{_forward_impl.1} parent=1 // pred_check
      _
    $region39: #{_forward_impl.1} parent=1 // pred_check_branch
      %36 = sbr.rel (0) target = $region41
    $region40: #{_forward_impl.1} parent=1 // pred_region
      _
    $region41: #{_forward_impl.1} parent=1 // pred_fallthru
      _
    // Predicated region
    $region42: #{_forward_impl.1} parent=1 // pred_check
      _
    $region43: #{_forward_impl.1} parent=1 // pred_check_branch
      %38 = sbr.rel (0) target = $region45
    $region44: #{_forward_impl.1} parent=1 // pred_region
      _
    $region45: #{_forward_impl.1} parent=1 // pred_fallthru
      _
    %v39 = vld [vmem:[%s0] sm:$0xff]
    %v40 = vld [vmem:[%s0 + $0x8] sm:$0xff]
    %v41 = vld [vmem:[%s1] sm:$0xff]
    %v42 = vld [vmem:[%s1 + $0x8] sm:$0xff]
    %v43 = vld [vmem:[%s1 + $0x10] sm:$0xff]
    %v44 = vld [vmem:[%s1 + $0x18] sm:$0xff]
    %v45 = vld [vmem:[%s1 + $0x20] sm:$0xff]
    %v46 = vld [vmem:[%s1 + $0x28] sm:$0xff]
    %v47 = vld [vmem:[%s1 + $0x30] sm:$0xff]
    %v48 = vld [vmem:[%s1 + $0x38] sm:$0xff]
    %v49 = vld [vmem:[%s1 + $0x40] sm:$0xff]
    %v50 = vld [vmem:[%s1 + $0x48] sm:$0xff]
    %v51 = vld [vmem:[%s1 + $0x50] sm:$0xff]
    %v52 = vld [vmem:[%s1 + $0x58] sm:$0xff]
    %v53 = vld [vmem:[%s1 + $0x60] sm:$0xff]
    %v54 = vld [vmem:[%s1 + $0x68] sm:$0xff]
    %v55 = vld [vmem:[%s1 + $0x70] sm:$0xff]
    %v56 = vld [vmem:[%s1 + $0x78] sm:$0xff]
    %v57 = vld [vmem:[%s2] sm:$0x1]
    %v59 = vperm.slane %v57, 0
    %61 = vmatpush.msra.mxu0 %v56
    %62 = vmatpush.msra.mxu0 %v55
    %63 = vmatpush.msra.mxu0 %v54
    %64 = vmatpush.msra.mxu0 %v53
    %65 = vmatpush.msra.mxu0 %v52
    %66 = vmatpush.msra.mxu0 %v51
    %67 = vmatpush.msra.mxu0 %v50
    %68 = vmatpush.msra.mxu0 %v49
    %69 = vmatpush.msra.mxu0 %v48
    %70 = vmatpush.msra.mxu0 %v47
    %71 = vmatpush.msra.mxu0 %v46
    %72 = vmatpush.msra.mxu0 %v45
    %73 = vmatpush.msra.mxu0 %v44
    %74 = vmatpush.msra.mxu0 %v43
    %75 = vmatpush.msra.mxu0 %v42
    %76 = vmatpush.msra.mxu0 %v41
    %77 = vmatmul.f32.gmra.mxu0 %v39
    %v78 = vpop.f32.mrf.mxu0
    %v79 = vadd.f32 %v59, %v78
    %80 = vmatmul.f32.gmra.mxu0 %v40
    %v81 = vpop.f32.mrf.mxu0
    %v82 = vadd.f32 %v59, %v81
    %83 = vdwg.mxu0
    %v84 = vadd.f32 %v39, %v79
    %v85 = vadd.f32 %v40, %v82
    %v86 = vld [vmem:[%s7] sm:$0x1]
    %v87 = vld [vmem:[%s8] sm:$0x1]
    %v88 = vlaneseq
    %v89 = vand.u32 %v88, 127
    %vm90 = vcmp.lt.s32.totalorder %v89, 32
    %v91 = vsel %vm90, 1, 0
    %v92 = vcvt.s32.f32 %v91
    %v93 = vmul.f32 %v84, %v92
    %v94 = vmul.f32 %v85, %v92
    %95 = vadd.xlane.f32.xlu0 %v93
    %v96 = vpop.xlane.xlu0 %95
    %97 = vadd.xlane.f32.xlu0 %v94
    %v98 = vpop.xlane.xlu0 %97
    %v99 = vmul.f32 %v96, 0.03125
    %v100 = vmul.f32 %v98, 0.03125
    %v101 = vsub.f32 %v84, %v99
    %v102 = vsub.f32 %v85, %v100
    %v103 = vmul.f32 %v101, %v92
    %v104 = vmul.f32 %v102, %v92
    %v105 = vmul.f32 %v103, %v103
    %v106 = vmul.f32 %v104, %v104
    %107 = vadd.xlane.f32.xlu0 %v105
    %v108 = vpop.xlane.xlu0 %107
    %109 = vadd.xlane.f32.xlu0 %v106
    %v110 = vpop.xlane.xlu0 %109
    %v111 = vmul.f32 %v108, 0.03125
    %v112 = vmul.f32 %v110, 0.03125
    %v113 = vadd.f32 %v111, 1e-05
    %v114 = vadd.f32 %v112, 1e-05
    %v115 = vrsqrt.pop %v113
    %v116 = vmul.f32 %v115, %v113
    %v117 = vmul.f32 %v116, %v115
    %v118 = vmul.f32 0.5, %v117
    %v119 = vsub.f32 1.5, %v118
    %v120 = vmul.f32 %v115, %v119
    %vm121 = vweird.f32 %v113
    %vm122 = vweird.f32 %v115
    %vm123 = vmor %vm121, %vm122
    %v124 = vsel %vm123, %v115, %v120
    %v125 = vrsqrt.pop %v114
    %v126 = vmul.f32 %v125, %v114
    %v127 = vmul.f32 %v126, %v125
    %v128 = vmul.f32 0.5, %v127
    %v129 = vsub.f32 1.5, %v128
    %v130 = vmul.f32 %v125, %v129
    %vm131 = vweird.f32 %v114
    %vm132 = vweird.f32 %v125
    %vm133 = vmor %vm131, %vm132
    %v134 = vsel %vm133, %v125, %v130
    %v135 = vmul.f32 %v103, %v124
    %v136 = vmul.f32 %v104, %v134
    %v138 = vperm.slane %v86, 0
    %v140 = vmul.f32 %v135, %v138
    %v141 = vmul.f32 %v136, %v138
    %v143 = vperm.slane %v87, 0
    %v145 = vadd.f32 %v140, %v143
    %v146 = vadd.f32 %v141, %v143
    %v147 = vld [vmem:[%s3] sm:$0xff]
    %v148 = vld [vmem:[%s3 + $0x8] sm:$0xff]
    %v149 = vld [vmem:[%s3 + $0x10] sm:$0xff]
    %v150 = vld [vmem:[%s3 + $0x18] sm:$0xff]
    %v151 = vld [vmem:[%s3 + $0x20] sm:$0xff]
    %v152 = vld [vmem:[%s3 + $0x28] sm:$0xff]
    %v153 = vld [vmem:[%s3 + $0x30] sm:$0xff]
    %v154 = vld [vmem:[%s3 + $0x38] sm:$0xff]
    %v155 = vld [vmem:[%s3 + $0x40] sm:$0xff]
    %v156 = vld [vmem:[%s3 + $0x48] sm:$0xff]
    %v157 = vld [vmem:[%s3 + $0x50] sm:$0xff]
    %v158 = vld [vmem:[%s3 + $0x58] sm:$0xff]
    %v159 = vld [vmem:[%s3 + $0x60] sm:$0xff]
    %v160 = vld [vmem:[%s3 + $0x68] sm:$0xff]
    %v161 = vld [vmem:[%s3 + $0x70] sm:$0xff]
    %v162 = vld [vmem:[%s3 + $0x78] sm:$0xff]
    %v163 = vld [vmem:[%s4] sm:$0x1]
    %v165 = vperm.slane %v163, 0
    %167 = vmatpush.msra.mxu0 %v162
    %168 = vmatpush.msra.mxu0 %v161
    %169 = vmatpush.msra.mxu0 %v160
    %170 = vmatpush.msra.mxu0 %v159
    %171 = vmatpush.msra.mxu0 %v158
    %172 = vmatpush.msra.mxu0 %v157
    %173 = vmatpush.msra.mxu0 %v156
    %174 = vmatpush.msra.mxu0 %v155
    %175 = vmatpush.msra.mxu0 %v154
    %176 = vmatpush.msra.mxu0 %v153
    %177 = vmatpush.msra.mxu0 %v152
    %178 = vmatpush.msra.mxu0 %v151
    %179 = vmatpush.msra.mxu0 %v150
    %180 = vmatpush.msra.mxu0 %v149
    %181 = vmatpush.msra.mxu0 %v148
    %182 = vmatpush.msra.mxu0 %v147
    %183 = vmatmul.f32.gmra.mxu0 %v145
    %v184 = vpop.f32.mrf.mxu0
    %v185 = vadd.f32 %v165, %v184
    %186 = vmatmul.f32.gmra.mxu0 %v146
    %v187 = vpop.f32.mrf.mxu0
    %v188 = vadd.f32 %v165, %v187
    %189 = vdwg.mxu0
    %v190 = vmul.f32 %v185, 0.5
    %v191 = vmul.f32 %v188, 0.5
    %v192 = vmul.f32 %v185, 0.70710677
    %v193 = vmul.f32 %v188, 0.70710677
    %v194 = vmul.f32 %v192, %v192
    %v195 = vmin.f32 16.0, %v194
    %v196 = vmul.f32 %v195, 2.1237322e-06
    %v197 = vadd.f32 %v196, 0.00028619796
    %v198 = vmul.f32 %v195, %v197
    %v199 = vadd.f32 %v198, 0.0036580483
    %v200 = vmul.f32 %v195, %v199
    %v201 = vadd.f32 %v200, 0.05243302
    %v202 = vmul.f32 %v195, %v201
    %v203 = vadd.f32 %v202, 0.18741608
    %v204 = vmul.f32 %v195, %v203
    %v205 = vadd.f32 %v204, 1.1283791
    %v206 = vmul.f32 %v192, %v205
    %v207 = vmul.f32 %v195, 3.8918573e-05
    %v208 = vadd.f32 %v207, 0.001143296
    %v209 = vmul.f32 %v195, %v208
    %v210 = vadd.f32 %v209, 0.014752088
    %v211 = vmul.f32 %v195, %v210
    %v212 = vadd.f32 %v211, 0.112945676
    %v213 = vmul.f32 %v195, %v212
    %v214 = vadd.f32 %v213, 0.4994258
    %v215 = vmul.f32 %v195, %v214
    %v216 = vadd.f32 %v215, 1.0
    %v217 = vrcp.pop %v216
    %v218 = vmul.f32 %v216, %v217
    %v219 = vsub.f32 1.0, %v218
    %v220 = vmul.f32 %v217, %v219
    %v221 = vadd.f32 %v217, %v220
    %vm222 = vweird.f32 %v216
    %vm223 = vweird.f32 %v217
    %vm224 = vmor %vm222, %vm223
    %v225 = vsel %vm224, %v217, %v221
    %v226 = vand.u32 2147483647, %v216
    %vm227 = vcmp.eq.f32.partialorder %v226, 8.507059e+37
    %v228 = vand.u32 %v216, 2147483648
    %v229 = vor.u32 1.1754944e-38, %v228
    %v230 = vsel %vm227, %v229, %v225
    %v231 = vmul.f32 %v206, %v230
    %v232 = vmin.f32 %v231, 1.0
    %v233 = vmax.f32 %v232, -1.0
    %v234 = vmul.f32 %v193, %v193
    %v235 = vmin.f32 16.0, %v234
    %v236 = vmul.f32 %v235, 2.1237322e-06
    %v237 = vadd.f32 %v236, 0.00028619796
    %v238 = vmul.f32 %v235, %v237
    %v239 = vadd.f32 %v238, 0.0036580483
    %v240 = vmul.f32 %v235, %v239
    %v241 = vadd.f32 %v240, 0.05243302
    %v242 = vmul.f32 %v235, %v241
    %v243 = vadd.f32 %v242, 0.18741608
    %v244 = vmul.f32 %v235, %v243
    %v245 = vadd.f32 %v244, 1.1283791
    %v246 = vmul.f32 %v193, %v245
    %v247 = vmul.f32 %v235, 3.8918573e-05
    %v248 = vadd.f32 %v247, 0.001143296
    %v249 = vmul.f32 %v235, %v248
    %v250 = vadd.f32 %v249, 0.014752088
    %v251 = vmul.f32 %v235, %v250
    %v252 = vadd.f32 %v251, 0.112945676
    %v253 = vmul.f32 %v235, %v252
    %v254 = vadd.f32 %v253, 0.4994258
    %v255 = vmul.f32 %v235, %v254
    %v256 = vadd.f32 %v255, 1.0
    %v257 = vrcp.pop %v256
    %v258 = vmul.f32 %v256, %v257
    %v259 = vsub.f32 1.0, %v258
    %v260 = vmul.f32 %v257, %v259
    %v261 = vadd.f32 %v257, %v260
    %vm262 = vweird.f32 %v256
    %vm263 = vweird.f32 %v257
    %vm264 = vmor %vm262, %vm263
    %v265 = vsel %vm264, %v257, %v261
    %v266 = vand.u32 2147483647, %v256
    %vm267 = vcmp.eq.f32.partialorder %v266, 8.507059e+37
    %v268 = vand.u32 %v256, 2147483648
    %v269 = vor.u32 1.1754944e-38, %v268
    %v270 = vsel %vm267, %v269, %v265
    %v271 = vmul.f32 %v246, %v270
    %v272 = vmin.f32 %v271, 1.0
    %v273 = vmax.f32 %v272, -1.0
    %v274 = vadd.f32 %v233, 1.0
    %v275 = vadd.f32 %v273, 1.0
    %v276 = vmul.f32 %v190, %v274
    %v277 = vmul.f32 %v191, %v275
    %v278 = vld [vmem:[%s5] sm:$0xff]
    %v279 = vld [vmem:[%s5 + $0x8] sm:$0xff]
    %v280 = vld [vmem:[%s5 + $0x10] sm:$0xff]
    %v281 = vld [vmem:[%s5 + $0x18] sm:$0xff]
    %v282 = vld [vmem:[%s5 + $0x20] sm:$0xff]
    %v283 = vld [vmem:[%s5 + $0x28] sm:$0xff]
    %v284 = vld [vmem:[%s5 + $0x30] sm:$0xff]
    %v285 = vld [vmem:[%s5 + $0x38] sm:$0xff]
    %v286 = vld [vmem:[%s5 + $0x40] sm:$0xff]
    %v287 = vld [vmem:[%s5 + $0x48] sm:$0xff]
    %v288 = vld [vmem:[%s5 + $0x50] sm:$0xff]
    %v289 = vld [vmem:[%s5 + $0x58] sm:$0xff]
    %v290 = vld [vmem:[%s5 + $0x60] sm:$0xff]
    %v291 = vld [vmem:[%s5 + $0x68] sm:$0xff]
    %v292 = vld [vmem:[%s5 + $0x70] sm:$0xff]
    %v293 = vld [vmem:[%s5 + $0x78] sm:$0xff]
    %v294 = vld [vmem:[%s6] sm:$0x1]
    %v296 = vperm.slane %v294, 0
    %298 = vmatpush.msra.mxu0 %v293
    %299 = vmatpush.msra.mxu0 %v292
    %300 = vmatpush.msra.mxu0 %v291
    %301 = vmatpush.msra.mxu0 %v290
    %302 = vmatpush.msra.mxu0 %v289
    %303 = vmatpush.msra.mxu0 %v288
    %304 = vmatpush.msra.mxu0 %v287
    %305 = vmatpush.msra.mxu0 %v286
    %306 = vmatpush.msra.mxu0 %v285
    %307 = vmatpush.msra.mxu0 %v284
    %308 = vmatpush.msra.mxu0 %v283
    %309 = vmatpush.msra.mxu0 %v282
    %310 = vmatpush.msra.mxu0 %v281
    %311 = vmatpush.msra.mxu0 %v280
    %312 = vmatpush.msra.mxu0 %v279
    %313 = vmatpush.msra.mxu0 %v278
    %314 = vmatmul.f32.gmra.mxu0 %v276
    %v315 = vpop.f32.mrf.mxu0
    %v316 = vadd.f32 %v296, %v315
    %317 = vmatmul.f32.gmra.mxu0 %v277
    %v318 = vpop.f32.mrf.mxu0
    %v319 = vadd.f32 %v296, %v318
    %320 = vdwg.mxu0
    %v321 = vadd.f32 %v185, %v316
    %v322 = vadd.f32 %v188, %v319
    %v323 = vld [vmem:[%s9] sm:$0x1]
    %v324 = vld [vmem:[%s10] sm:$0x1]
    %vm325 = vcmp.lt.s32.totalorder %v89, 64
    %v326 = vsel %vm325, 1, 0
    %v327 = vcvt.s32.f32 %v326
    %v328 = vmul.f32 %v321, %v327
    %v329 = vmul.f32 %v322, %v327
    %330 = vadd.xlane.f32.xlu0 %v328
    %v331 = vpop.xlane.xlu0 %330
    %332 = vadd.xlane.f32.xlu0 %v329
    %v333 = vpop.xlane.xlu0 %332
    %v334 = vmul.f32 %v331, 0.015625
    %v335 = vmul.f32 %v333, 0.015625
    %v336 = vsub.f32 %v321, %v334
    %v337 = vsub.f32 %v322, %v335
    %v338 = vmul.f32 %v336, %v327
    %v339 = vmul.f32 %v337, %v327
    %v340 = vmul.f32 %v338, %v338
    %v341 = vmul.f32 %v339, %v339
    %342 = vadd.xlane.f32.xlu0 %v340
    %v343 = vpop.xlane.xlu0 %342
    %344 = vadd.xlane.f32.xlu0 %v341
    %v345 = vpop.xlane.xlu0 %344
    %v346 = vmul.f32 %v343, 0.015625
    %v347 = vmul.f32 %v345, 0.015625
    %v348 = vadd.f32 %v346, 1e-05
    %v349 = vadd.f32 %v347, 1e-05
    %v350 = vrsqrt.pop %v348
    %v351 = vmul.f32 %v350, %v348
    %v352 = vmul.f32 %v351, %v350
    %v353 = vmul.f32 0.5, %v352
    %v354 = vsub.f32 1.5, %v353
    %v355 = vmul.f32 %v350, %v354
    %vm356 = vweird.f32 %v348
    %vm357 = vweird.f32 %v350
    %vm358 = vmor %vm356, %vm357
    %v359 = vsel %vm358, %v350, %v355
    %v360 = vrsqrt.pop %v349
    %v361 = vmul.f32 %v360, %v349
    %v362 = vmul.f32 %v361, %v360
    %v363 = vmul.f32 0.5, %v362
    %v364 = vsub.f32 1.5, %v363
    %v365 = vmul.f32 %v360, %v364
    %vm366 = vweird.f32 %v349
    %vm367 = vweird.f32 %v360
    %vm368 = vmor %vm366, %vm367
    %v369 = vsel %vm368, %v360, %v365
    %v370 = vmul.f32 %v338, %v359
    %v371 = vmul.f32 %v339, %v369
    %v373 = vperm.slane %v323, 0
    %v375 = vmul.f32 %v370, %v373
    %v376 = vmul.f32 %v371, %v373
    %v378 = vperm.slane %v324, 0
    %v380 = vadd.f32 %v375, %v378
    %v381 = vadd.f32 %v376, %v378
    %382 = vst [vmem:[#allocation2] sm:$0xff] %v380
    %383 = vst [vmem:[#allocation2 + $0x8] sm:$0xff] %v381
    // Predicated region
    $region46: #{_forward_impl.1} parent=1 // pred_check
      _
    $region47: #{_forward_impl.1} parent=1 // pred_check_branch
      %385 = sbr.rel (0) target = $region49
    $region48: #{_forward_impl.1} parent=1 // pred_region
      %387 = vsyncadd [#allocation3], 0
      %s388 = sshll.u32 [#allocation2], 4
      %s389 = int_to_ptr.vmem [resolvable:$true] %s388
      %s390 = sshll.u32 %s11, 4
      %s391 = int_to_ptr.hbm [resolvable:$true] %s390
      %396 = dma.vmem_to_hbm [thread:$0]  %s389, 256, %s391, [#allocation3], 128, 128, 8
    $region49: #{_forward_impl.1} parent=1 // pred_fallthru
      _
    // Predicated region
    $region50: #{_forward_impl.1} parent=1 // pred_check
      _
    $region51: #{_forward_impl.1} parent=1 // pred_check_branch
      %398 = sbr.rel (0) target = $region53
    $region52: #{_forward_impl.1} parent=1 // pred_region
      %400 = dma.done [#allocation3], 256
    $region53: #{_forward_impl.1} parent=1 // pred_fallthru
      _
    %401 = vsyncpa [#allocation3], 1

// kernel: _forward_impl.1
$region0: #{_forward_impl.1}
  #allocation0 [shape = 'u32[]', space=smem, size = 0x4, offset = 0x4, fixed_abs, tag = 'smem constant byte address 0x4 - core index']
  #allocation1 [shape = 'u32[72,128]{1,0:T(1,128)}', space=vmem, size = 0x9000, scoped, tag = 'internal scratch']
  %s0 = inlined_call_operand.vmem [shape: f32[16,128], index: 0, kind: input, shape index: {}]
  %s1 = inlined_call_operand.vmem [shape: f32[128,128], index: 1, kind: input, shape index: {}]
  %s2 = inlined_call_operand.vmem [shape: f32[1,128], index: 2, kind: input, shape index: {}]
  %s3 = inlined_call_operand.vmem [shape: f32[128,128], index: 3, kind: input, shape index: {}]
  %s4 = inlined_call_operand.vmem [shape: f32[1,128], index: 4, kind: input, shape index: {}]
  %s5 = inlined_call_operand.vmem [shape: f32[128,128], index: 5, kind: input, shape index: {}]
  %s6 = inlined_call_operand.vmem [shape: f32[1,128], index: 6, kind: input, shape index: {}]
  %s7 = inlined_call_operand.vmem [shape: f32[1,128], index: 7, kind: input, shape index: {}]
  %s8 = inlined_call_operand.vmem [shape: f32[1,128], index: 8, kind: input, shape index: {}]
  %s9 = inlined_call_operand.vmem [shape: f32[1,128], index: 9, kind: input, shape index: {}]
  %s10 = inlined_call_operand.vmem [shape: f32[1,128], index: 10, kind: input, shape index: {}]
  %s11 = inlined_call_operand.hbm [shape: f32[16,128], index: 11, kind: output, shape index: {}]
  %s12 = sld [smem:[#allocation0]]
  $region54: #{_forward_impl.1} parent=0
    _
  %s14 = ssub.s32 1, %s12
  %s15 = scalar_select 0, %s14, %s12
  $region1: #{_forward_impl.1} parent=0
    #allocation2 [shape = 'u8[8192]{0}', space=vmem, size = 0x2000, scoped, tag = 'output window, operand 0, single buffered']
    #allocation3 [shape = 's32[1]{0}', space=sflag, size = 0x4, scoped, tag = 'scoped memory for _forward_impl.1']
    %16 = vsyncpa [#allocation3], 0
    // Predicated region
    $region2: #{_forward_impl.1} parent=1 // pred_check
      _
    $region3: #{_forward_impl.1} parent=1 // pred_check_branch
      %18 = sbr.rel (0) target = $region5
    $region4: #{_forward_impl.1} parent=1 // pred_region
      _
    $region5: #{_forward_impl.1} parent=1 // pred_fallthru
      _
    // Predicated region
    $region6: #{_forward_impl.1} parent=1 // pred_check
      _
    $region7: #{_forward_impl.1} parent=1 // pred_check_branch
      %20 = sbr.rel (0) target = $region9
    $region8: #{_forward_impl.1} parent=1 // pred_region
      _
    $region9: #{_forward_impl.1} parent=1 // pred_fallthru
      _
    // Predicated region
    $region10: #{_forward_impl.1} parent=1 // pred_check
      _
    $region11: #{_forward_impl.1} parent=1 // pred_check_branch
      %22 = sbr.rel (0) target = $region13
    $region12: #{_forward_impl.1} parent=1 // pred_region
      _
    $region13: #{_forward_impl.1} parent=1 // pred_fallthru
      _
    // Predicated region
    $region14: #{_forward_impl.1} parent=1 // pred_check
      _
    $region15: #{_forward_impl.1} parent=1 // pred_check_branch
      %24 = sbr.rel (0) target = $region17
    $region16: #{_forward_impl.1} parent=1 // pred_region
      _
    $region17: #{_forward_impl.1} parent=1 // pred_fallthru
      _
    // Predicated region
    $region18: #{_forward_impl.1} parent=1 // pred_check
      _
    $region19: #{_forward_impl.1} parent=1 // pred_check_branch
      %26 = sbr.rel (0) target = $region21
    $region20: #{_forward_impl.1} parent=1 // pred_region
      _
    $region21: #{_forward_impl.1} parent=1 // pred_fallthru
      _
    // Predicated region
    $region22: #{_forward_impl.1} parent=1 // pred_check
      _
    $region23: #{_forward_impl.1} parent=1 // pred_check_branch
      %28 = sbr.rel (0) target = $region25
    $region24: #{_forward_impl.1} parent=1 // pred_region
      _
    $region25: #{_forward_impl.1} parent=1 // pred_fallthru
      _
    // Predicated region
    $region26: #{_forward_impl.1} parent=1 // pred_check
      _
    $region27: #{_forward_impl.1} parent=1 // pred_check_branch
      %30 = sbr.rel (0) target = $region29
    $region28: #{_forward_impl.1} parent=1 // pred_region
      _
    $region29: #{_forward_impl.1} parent=1 // pred_fallthru
      _
    // Predicated region
    $region30: #{_forward_impl.1} parent=1 // pred_check
      _
    $region31: #{_forward_impl.1} parent=1 // pred_check_branch
      %32 = sbr.rel (0) target = $region33
    $region32: #{_forward_impl.1} parent=1 // pred_region
      _
    $region33: #{_forward_impl.1} parent=1 // pred_fallthru
      _
    // Predicated region
    $region34: #{_forward_impl.1} parent=1 // pred_check
      _
    $region35: #{_forward_impl.1} parent=1 // pred_check_branch
      %34 = sbr.rel (0) target = $region37
    $region36: #{_forward_impl.1} parent=1 // pred_region
      _
    $region37: #{_forward_impl.1} parent=1 // pred_fallthru
      _
    // Predicated region
    $region38: #{_forward_impl.1} parent=1 // pred_check
      _
    $region39: #{_forward_impl.1} parent=1 // pred_check_branch
      %36 = sbr.rel (0) target = $region41
    $region40: #{_forward_impl.1} parent=1 // pred_region
      _
    $region41: #{_forward_impl.1} parent=1 // pred_fallthru
      _
    // Predicated region
    $region42: #{_forward_impl.1} parent=1 // pred_check
      _
    $region43: #{_forward_impl.1} parent=1 // pred_check_branch
      %38 = sbr.rel (0) target = $region45
    $region44: #{_forward_impl.1} parent=1 // pred_region
      _
    $region45: #{_forward_impl.1} parent=1 // pred_fallthru
      _
    %v39 = vld [vmem:[%s0] sm:$0xff]
    %v40 = vld [vmem:[%s0 + $0x8] sm:$0xff]
    %v41 = vld [vmem:[%s1] sm:$0xff]
    %v42 = vld [vmem:[%s1 + $0x8] sm:$0xff]
    %v43 = vld [vmem:[%s1 + $0x10] sm:$0xff]
    %v44 = vld [vmem:[%s1 + $0x18] sm:$0xff]
    %v45 = vld [vmem:[%s1 + $0x20] sm:$0xff]
    %v46 = vld [vmem:[%s1 + $0x28] sm:$0xff]
    %v47 = vld [vmem:[%s1 + $0x30] sm:$0xff]
    %v48 = vld [vmem:[%s1 + $0x38] sm:$0xff]
    %v49 = vld [vmem:[%s1 + $0x40] sm:$0xff]
    %v50 = vld [vmem:[%s1 + $0x48] sm:$0xff]
    %v51 = vld [vmem:[%s1 + $0x50] sm:$0xff]
    %v52 = vld [vmem:[%s1 + $0x58] sm:$0xff]
    %v53 = vld [vmem:[%s1 + $0x60] sm:$0xff]
    %v54 = vld [vmem:[%s1 + $0x68] sm:$0xff]
    %v55 = vld [vmem:[%s1 + $0x70] sm:$0xff]
    %v56 = vld [vmem:[%s1 + $0x78] sm:$0xff]
    %v57 = vld [vmem:[%s2] sm:$0x1]
    %v59 = vperm.slane %v57, 0
    %61 = vmatpush.msra.mxu0 %v56
    %62 = vmatpush.msra.mxu0 %v55
    %63 = vmatpush.msra.mxu0 %v54
    %64 = vmatpush.msra.mxu0 %v53
    %65 = vmatpush.msra.mxu0 %v52
    %66 = vmatpush.msra.mxu0 %v51
    %67 = vmatpush.msra.mxu0 %v50
    %68 = vmatpush.msra.mxu0 %v49
    %69 = vmatpush.msra.mxu0 %v48
    %70 = vmatpush.msra.mxu0 %v47
    %71 = vmatpush.msra.mxu0 %v46
    %72 = vmatpush.msra.mxu0 %v45
    %73 = vmatpush.msra.mxu0 %v44
    %74 = vmatpush.msra.mxu0 %v43
    %75 = vmatpush.msra.mxu0 %v42
    %76 = vmatpush.msra.mxu0 %v41
    %77 = vmatmul.f32.gmra.mxu0 %v39
    %v78 = vpop.f32.mrf.mxu0
    %v79 = vadd.f32 %v59, %v78
    %80 = vmatmul.f32.gmra.mxu0 %v40
    %v81 = vpop.f32.mrf.mxu0
    %v82 = vadd.f32 %v59, %v81
    %83 = vdwg.mxu0
    %v84 = vadd.f32 %v39, %v79
    %v85 = vadd.f32 %v40, %v82
    %v86 = vld [vmem:[%s7] sm:$0x1]
    %v87 = vld [vmem:[%s8] sm:$0x1]
    %v88 = vlaneseq
    %v89 = vand.u32 %v88, 127
    %vm90 = vcmp.lt.s32.totalorder %v89, 32
    %v91 = vsel %vm90, 1, 0
    %v92 = vcvt.s32.f32 %v91
    %v93 = vmul.f32 %v84, %v92
    %v94 = vmul.f32 %v85, %v92
    %95 = vadd.xlane.f32.xlu0 %v93
    %v96 = vpop.xlane.xlu0 %95
    %97 = vadd.xlane.f32.xlu0 %v94
    %v98 = vpop.xlane.xlu0 %97
    %v99 = vmul.f32 %v96, 0.03125
    %v100 = vmul.f32 %v98, 0.03125
    %v101 = vsub.f32 %v84, %v99
    %v102 = vsub.f32 %v85, %v100
    %v103 = vmul.f32 %v101, %v92
    %v104 = vmul.f32 %v102, %v92
    %v105 = vmul.f32 %v103, %v103
    %v106 = vmul.f32 %v104, %v104
    %107 = vadd.xlane.f32.xlu0 %v105
    %v108 = vpop.xlane.xlu0 %107
    %109 = vadd.xlane.f32.xlu0 %v106
    %v110 = vpop.xlane.xlu0 %109
    %v111 = vmul.f32 %v108, 0.03125
    %v112 = vmul.f32 %v110, 0.03125
    %v113 = vadd.f32 %v111, 1e-05
    %v114 = vadd.f32 %v112, 1e-05
    %v115 = vrsqrt.pop %v113
    %v116 = vmul.f32 %v115, %v113
    %v117 = vmul.f32 %v116, %v115
    %v118 = vmul.f32 0.5, %v117
    %v119 = vsub.f32 1.5, %v118
    %v120 = vmul.f32 %v115, %v119
    %vm121 = vweird.f32 %v113
    %vm122 = vweird.f32 %v115
    %vm123 = vmor %vm121, %vm122
    %v124 = vsel %vm123, %v115, %v120
    %v125 = vrsqrt.pop %v114
    %v126 = vmul.f32 %v125, %v114
    %v127 = vmul.f32 %v126, %v125
    %v128 = vmul.f32 0.5, %v127
    %v129 = vsub.f32 1.5, %v128
    %v130 = vmul.f32 %v125, %v129
    %vm131 = vweird.f32 %v114
    %vm132 = vweird.f32 %v125
    %vm133 = vmor %vm131, %vm132
    %v134 = vsel %vm133, %v125, %v130
    %v135 = vmul.f32 %v103, %v124
    %v136 = vmul.f32 %v104, %v134
    %v138 = vperm.slane %v86, 0
    %v140 = vmul.f32 %v135, %v138
    %v141 = vmul.f32 %v136, %v138
    %v143 = vperm.slane %v87, 0
    %v145 = vadd.f32 %v140, %v143
    %v146 = vadd.f32 %v141, %v143
    %v147 = vld [vmem:[%s3] sm:$0xff]
    %v148 = vld [vmem:[%s3 + $0x8] sm:$0xff]
    %v149 = vld [vmem:[%s3 + $0x10] sm:$0xff]
    %v150 = vld [vmem:[%s3 + $0x18] sm:$0xff]
    %v151 = vld [vmem:[%s3 + $0x20] sm:$0xff]
    %v152 = vld [vmem:[%s3 + $0x28] sm:$0xff]
    %v153 = vld [vmem:[%s3 + $0x30] sm:$0xff]
    %v154 = vld [vmem:[%s3 + $0x38] sm:$0xff]
    %v155 = vld [vmem:[%s3 + $0x40] sm:$0xff]
    %v156 = vld [vmem:[%s3 + $0x48] sm:$0xff]
    %v157 = vld [vmem:[%s3 + $0x50] sm:$0xff]
    %v158 = vld [vmem:[%s3 + $0x58] sm:$0xff]
    %v159 = vld [vmem:[%s3 + $0x60] sm:$0xff]
    %v160 = vld [vmem:[%s3 + $0x68] sm:$0xff]
    %v161 = vld [vmem:[%s3 + $0x70] sm:$0xff]
    %v162 = vld [vmem:[%s3 + $0x78] sm:$0xff]
    %v163 = vld [vmem:[%s4] sm:$0x1]
    %v165 = vperm.slane %v163, 0
    %167 = vmatpush.msra.mxu0 %v162
    %168 = vmatpush.msra.mxu0 %v161
    %169 = vmatpush.msra.mxu0 %v160
    %170 = vmatpush.msra.mxu0 %v159
    %171 = vmatpush.msra.mxu0 %v158
    %172 = vmatpush.msra.mxu0 %v157
    %173 = vmatpush.msra.mxu0 %v156
    %174 = vmatpush.msra.mxu0 %v155
    %175 = vmatpush.msra.mxu0 %v154
    %176 = vmatpush.msra.mxu0 %v153
    %177 = vmatpush.msra.mxu0 %v152
    %178 = vmatpush.msra.mxu0 %v151
    %179 = vmatpush.msra.mxu0 %v150
    %180 = vmatpush.msra.mxu0 %v149
    %181 = vmatpush.msra.mxu0 %v148
    %182 = vmatpush.msra.mxu0 %v147
    %183 = vmatmul.f32.gmra.mxu0 %v145
    %v184 = vpop.f32.mrf.mxu0
    %v185 = vadd.f32 %v165, %v184
    %186 = vmatmul.f32.gmra.mxu0 %v146
    %v187 = vpop.f32.mrf.mxu0
    %v188 = vadd.f32 %v165, %v187
    %189 = vdwg.mxu0
    %v190 = vmul.f32 %v185, 0.5
    %v191 = vmul.f32 %v188, 0.5
    %v192 = vmul.f32 %v185, 0.70710677
    %v193 = vmul.f32 %v188, 0.70710677
    %v194 = vmul.f32 %v192, %v192
    %v195 = vmin.f32 16.0, %v194
    %v196 = vmul.f32 %v195, 2.1237322e-06
    %v197 = vadd.f32 %v196, 0.00028619796
    %v198 = vmul.f32 %v195, %v197
    %v199 = vadd.f32 %v198, 0.0036580483
    %v200 = vmul.f32 %v195, %v199
    %v201 = vadd.f32 %v200, 0.05243302
    %v202 = vmul.f32 %v195, %v201
    %v203 = vadd.f32 %v202, 0.18741608
    %v204 = vmul.f32 %v195, %v203
    %v205 = vadd.f32 %v204, 1.1283791
    %v206 = vmul.f32 %v192, %v205
    %v207 = vmul.f32 %v195, 3.8918573e-05
    %v208 = vadd.f32 %v207, 0.001143296
    %v209 = vmul.f32 %v195, %v208
    %v210 = vadd.f32 %v209, 0.014752088
    %v211 = vmul.f32 %v195, %v210
    %v212 = vadd.f32 %v211, 0.112945676
    %v213 = vmul.f32 %v195, %v212
    %v214 = vadd.f32 %v213, 0.4994258
    %v215 = vmul.f32 %v195, %v214
    %v216 = vadd.f32 %v215, 1.0
    %v217 = vrcp.pop %v216
    %v218 = vmul.f32 %v216, %v217
    %v219 = vsub.f32 1.0, %v218
    %v220 = vmul.f32 %v217, %v219
    %v221 = vadd.f32 %v217, %v220
    %vm222 = vweird.f32 %v216
    %vm223 = vweird.f32 %v217
    %vm224 = vmor %vm222, %vm223
    %v225 = vsel %vm224, %v217, %v221
    %v226 = vand.u32 2147483647, %v216
    %vm227 = vcmp.eq.f32.partialorder %v226, 8.507059e+37
    %v228 = vand.u32 %v216, 2147483648
    %v229 = vor.u32 1.1754944e-38, %v228
    %v230 = vsel %vm227, %v229, %v225
    %v231 = vmul.f32 %v206, %v230
    %v232 = vmin.f32 %v231, 1.0
    %v233 = vmax.f32 %v232, -1.0
    %v234 = vmul.f32 %v193, %v193
    %v235 = vmin.f32 16.0, %v234
    %v236 = vmul.f32 %v235, 2.1237322e-06
    %v237 = vadd.f32 %v236, 0.00028619796
    %v238 = vmul.f32 %v235, %v237
    %v239 = vadd.f32 %v238, 0.0036580483
    %v240 = vmul.f32 %v235, %v239
    %v241 = vadd.f32 %v240, 0.05243302
    %v242 = vmul.f32 %v235, %v241
    %v243 = vadd.f32 %v242, 0.18741608
    %v244 = vmul.f32 %v235, %v243
    %v245 = vadd.f32 %v244, 1.1283791
    %v246 = vmul.f32 %v193, %v245
    %v247 = vmul.f32 %v235, 3.8918573e-05
    %v248 = vadd.f32 %v247, 0.001143296
    %v249 = vmul.f32 %v235, %v248
    %v250 = vadd.f32 %v249, 0.014752088
    %v251 = vmul.f32 %v235, %v250
    %v252 = vadd.f32 %v251, 0.112945676
    %v253 = vmul.f32 %v235, %v252
    %v254 = vadd.f32 %v253, 0.4994258
    %v255 = vmul.f32 %v235, %v254
    %v256 = vadd.f32 %v255, 1.0
    %v257 = vrcp.pop %v256
    %v258 = vmul.f32 %v256, %v257
    %v259 = vsub.f32 1.0, %v258
    %v260 = vmul.f32 %v257, %v259
    %v261 = vadd.f32 %v257, %v260
    %vm262 = vweird.f32 %v256
    %vm263 = vweird.f32 %v257
    %vm264 = vmor %vm262, %vm263
    %v265 = vsel %vm264, %v257, %v261
    %v266 = vand.u32 2147483647, %v256
    %vm267 = vcmp.eq.f32.partialorder %v266, 8.507059e+37
    %v268 = vand.u32 %v256, 2147483648
    %v269 = vor.u32 1.1754944e-38, %v268
    %v270 = vsel %vm267, %v269, %v265
    %v271 = vmul.f32 %v246, %v270
    %v272 = vmin.f32 %v271, 1.0
    %v273 = vmax.f32 %v272, -1.0
    %v274 = vadd.f32 %v233, 1.0
    %v275 = vadd.f32 %v273, 1.0
    %v276 = vmul.f32 %v190, %v274
    %v277 = vmul.f32 %v191, %v275
    %v278 = vld [vmem:[%s5] sm:$0xff]
    %v279 = vld [vmem:[%s5 + $0x8] sm:$0xff]
    %v280 = vld [vmem:[%s5 + $0x10] sm:$0xff]
    %v281 = vld [vmem:[%s5 + $0x18] sm:$0xff]
    %v282 = vld [vmem:[%s5 + $0x20] sm:$0xff]
    %v283 = vld [vmem:[%s5 + $0x28] sm:$0xff]
    %v284 = vld [vmem:[%s5 + $0x30] sm:$0xff]
    %v285 = vld [vmem:[%s5 + $0x38] sm:$0xff]
    %v286 = vld [vmem:[%s5 + $0x40] sm:$0xff]
    %v287 = vld [vmem:[%s5 + $0x48] sm:$0xff]
    %v288 = vld [vmem:[%s5 + $0x50] sm:$0xff]
    %v289 = vld [vmem:[%s5 + $0x58] sm:$0xff]
    %v290 = vld [vmem:[%s5 + $0x60] sm:$0xff]
    %v291 = vld [vmem:[%s5 + $0x68] sm:$0xff]
    %v292 = vld [vmem:[%s5 + $0x70] sm:$0xff]
    %v293 = vld [vmem:[%s5 + $0x78] sm:$0xff]
    %v294 = vld [vmem:[%s6] sm:$0x1]
    %v296 = vperm.slane %v294, 0
    %298 = vmatpush.msra.mxu0 %v293
    %299 = vmatpush.msra.mxu0 %v292
    %300 = vmatpush.msra.mxu0 %v291
    %301 = vmatpush.msra.mxu0 %v290
    %302 = vmatpush.msra.mxu0 %v289
    %303 = vmatpush.msra.mxu0 %v288
    %304 = vmatpush.msra.mxu0 %v287
    %305 = vmatpush.msra.mxu0 %v286
    %306 = vmatpush.msra.mxu0 %v285
    %307 = vmatpush.msra.mxu0 %v284
    %308 = vmatpush.msra.mxu0 %v283
    %309 = vmatpush.msra.mxu0 %v282
    %310 = vmatpush.msra.mxu0 %v281
    %311 = vmatpush.msra.mxu0 %v280
    %312 = vmatpush.msra.mxu0 %v279
    %313 = vmatpush.msra.mxu0 %v278
    %314 = vmatmul.f32.gmra.mxu0 %v276
    %v315 = vpop.f32.mrf.mxu0
    %v316 = vadd.f32 %v296, %v315
    %317 = vmatmul.f32.gmra.mxu0 %v277
    %v318 = vpop.f32.mrf.mxu0
    %v319 = vadd.f32 %v296, %v318
    %320 = vdwg.mxu0
    %v321 = vadd.f32 %v185, %v316
    %v322 = vadd.f32 %v188, %v319
    %v323 = vld [vmem:[%s9] sm:$0x1]
    %v324 = vld [vmem:[%s10] sm:$0x1]
    %vm325 = vcmp.lt.s32.totalorder %v89, 64
    %v326 = vsel %vm325, 1, 0
    %v327 = vcvt.s32.f32 %v326
    %v328 = vmul.f32 %v321, %v327
    %v329 = vmul.f32 %v322, %v327
    %330 = vadd.xlane.f32.xlu0 %v328
    %v331 = vpop.xlane.xlu0 %330
    %332 = vadd.xlane.f32.xlu0 %v329
    %v333 = vpop.xlane.xlu0 %332
    %v334 = vmul.f32 %v331, 0.015625
    %v335 = vmul.f32 %v333, 0.015625
    %v336 = vsub.f32 %v321, %v334
    %v337 = vsub.f32 %v322, %v335
    %v338 = vmul.f32 %v336, %v327
    %v339 = vmul.f32 %v337, %v327
    %v340 = vmul.f32 %v338, %v338
    %v341 = vmul.f32 %v339, %v339
    %342 = vadd.xlane.f32.xlu0 %v340
    %v343 = vpop.xlane.xlu0 %342
    %344 = vadd.xlane.f32.xlu0 %v341
    %v345 = vpop.xlane.xlu0 %344
    %v346 = vmul.f32 %v343, 0.015625
    %v347 = vmul.f32 %v345, 0.015625
    %v348 = vadd.f32 %v346, 1e-05
    %v349 = vadd.f32 %v347, 1e-05
    %v350 = vrsqrt.pop %v348
    %v351 = vmul.f32 %v350, %v348
    %v352 = vmul.f32 %v351, %v350
    %v353 = vmul.f32 0.5, %v352
    %v354 = vsub.f32 1.5, %v353
    %v355 = vmul.f32 %v350, %v354
    %vm356 = vweird.f32 %v348
    %vm357 = vweird.f32 %v350
    %vm358 = vmor %vm356, %vm357
    %v359 = vsel %vm358, %v350, %v355
    %v360 = vrsqrt.pop %v349
    %v361 = vmul.f32 %v360, %v349
    %v362 = vmul.f32 %v361, %v360
    %v363 = vmul.f32 0.5, %v362
    %v364 = vsub.f32 1.5, %v363
    %v365 = vmul.f32 %v360, %v364
    %vm366 = vweird.f32 %v349
    %vm367 = vweird.f32 %v360
    %vm368 = vmor %vm366, %vm367
    %v369 = vsel %vm368, %v360, %v365
    %v370 = vmul.f32 %v338, %v359
    %v371 = vmul.f32 %v339, %v369
    %v373 = vperm.slane %v323, 0
    %v375 = vmul.f32 %v370, %v373
    %v376 = vmul.f32 %v371, %v373
    %v378 = vperm.slane %v324, 0
    %v380 = vadd.f32 %v375, %v378
    %v381 = vadd.f32 %v376, %v378
    %382 = vst [vmem:[#allocation2] sm:$0xff] %v380
    %383 = vst [vmem:[#allocation2 + $0x8] sm:$0xff] %v381
    // Predicated region
    $region46: #{_forward_impl.1} parent=1 // pred_check
      _
    $region47: #{_forward_impl.1} parent=1 // pred_check_branch
      %385 = sbr.rel (0) target = $region49
    $region48: #{_forward_impl.1} parent=1 // pred_region
      %387 = vsyncadd [#allocation3], 0
      %s388 = sshll.u32 [#allocation2], 4
      %s389 = int_to_ptr.vmem [resolvable:$true] %s388
      %s390 = sshll.u32 %s11, 4
      %s391 = int_to_ptr.hbm [resolvable:$true] %s390
      %396 = dma.vmem_to_hbm [thread:$0]  %s389, 256, %s391, [#allocation3], 128, 128, 8
    $region49: #{_forward_impl.1} parent=1 // pred_fallthru
      _
    // Predicated region
    $region50: #{_forward_impl.1} parent=1 // pred_check
      _
    $region51: #{_forward_impl.1} parent=1 // pred_check_branch
      %398 = sbr.rel (0) target = $region53
    $region52: #{_forward_impl.1} parent=1 // pred_region
      %400 = dma.done [#allocation3], 256
    $region53: #{_forward_impl.1} parent=1 // pred_fallthru
      _
    %401 = vsyncpa [#allocation3], 1

</llo_original>
